<compile_context>
chip_gen: v7x
topology: tpu7x:2x2x1
jax: 0.10.0
libtpu: 0.0.40
codegen_flags: <defaults>
</compile_context>

<pallas_src>
import jax
import jax.numpy as jnp
from jax import lax
from jax.experimental import pallas as pl
from jax.experimental.pallas import tpu as pltpu

IN_DIM = 70
HID_DIM = 16
OUT_DIM = 5
NEG_SLOPE = 0.01          # nn.LeakyReLU default negative_slope
TB_MAX = 8192             # batch-tile rows for large batches (multiple of 8)
PALLAS_MIN_BATCH = 4096   # below this, XLA fusion beats kernel-launch overhead


def mlp_kernel(x_ref, w1_ref, b1_ref, w2_ref, b2_ref, o_ref):
    # x_ref : (TB, IN_DIM)        natural row-major batch tile
    # w1_ref: (HID_DIM, IN_DIM)   PyTorch (out, in) layout, resident in VMEM
    # b1_ref: (1, HID_DIM)
    # w2_ref: (OUT_DIM, HID_DIM)
    # b2_ref: (1, OUT_DIM)
    # o_ref : (TB, OUT_DIM)
    x = x_ref[...]
    # hidden = x @ W1^T + b1 : contract feature dims directly (no transpose).
    h = lax.dot_general(x, w1_ref[...], (((1,), (1,)), ((), ())),
                        preferred_element_type=jnp.float32)        # (TB, HID)
    h = h + b1_ref[...]
    # LeakyReLU (negative_slope = 0.01)
    h = jnp.where(h >= 0, h, NEG_SLOPE * h)
    # out = h @ W2^T + b2
    y = lax.dot_general(h, w2_ref[...], (((1,), (1,)), ((), ())),
                        preferred_element_type=jnp.float32)        # (TB, OUT)
    o_ref[...] = (y + b2_ref[...]).astype(o_ref.dtype)


@jax.jit
def my_mlp_pallas(x, w1, b1, w2, b2):
    """x: (B, 70) f32. w1: (16, 70), b1: (16,), w2: (5, 16), b2: (5,). Returns (B, 5)."""
    B = x.shape[0]
    # Full-extent block for small B (always layout-legal); TB_MAX rows otherwise.
    TB = B if B <= TB_MAX else TB_MAX
    grid = (pl.cdiv(B, TB),)

    b1r = b1.reshape(1, HID_DIM)
    b2r = b2.reshape(1, OUT_DIM)

    bytes_accessed = 4 * (B * (IN_DIM + OUT_DIM)
                          + HID_DIM * (IN_DIM + 1) + OUT_DIM * (HID_DIM + 1))
    flops = 2 * B * (IN_DIM * HID_DIM + HID_DIM * OUT_DIM)

    return pl.pallas_call(
        mlp_kernel,
        out_shape=jax.ShapeDtypeStruct((B, OUT_DIM), x.dtype),
        grid=grid,
        in_specs=[
            # activations: one contiguous batch tile per grid step
            pl.BlockSpec((TB, IN_DIM), lambda i: (i, 0)),
            # weights/biases: constant block index -> stay resident in VMEM
            pl.BlockSpec((HID_DIM, IN_DIM), lambda i: (0, 0)),
            pl.BlockSpec((1, HID_DIM), lambda i: (0, 0)),
            pl.BlockSpec((OUT_DIM, HID_DIM), lambda i: (0, 0)),
            pl.BlockSpec((1, OUT_DIM), lambda i: (0, 0)),
        ],
        out_specs=pl.BlockSpec((TB, OUT_DIM), lambda i: (i, 0)),
        compiler_params=pltpu.CompilerParams(
            # independent batch tiles -> shard across both TensorCores on v7x
            dimension_semantics=("parallel",),
            # ~17 MiB double-buffered working set at TB=8192; explicit limit keeps
            # v5e's 16 MiB default scoped VMEM from rejecting the pipeline while
            # staying well under v7x's 64 MiB physical VMEM.
            vmem_limit_bytes=32 * 1024 * 1024,
        ),
        cost_estimate=pl.CostEstimate(
            flops=flops, transcendentals=0, bytes_accessed=bytes_accessed),
    )(x, w1, b1r, w2, b2r)


def reference(x, w1, b1, w2, b2):
    h = x @ w1.T + b1
    h = jnp.where(h >= 0, h, NEG_SLOPE * h)
    return h @ w2.T + b2


def my_mlp(x, w1, b1, w2, b2):
    """Dispatcher: tiny batches through plain XLA (launch overhead dominates),
    large batches through the Pallas kernel."""
    if x.shape[0] < PALLAS_MIN_BATCH:
        return reference(x, w1, b1, w2, b2)
    return my_mlp_pallas(x, w1, b1, w2, b2)


def init_params(key):
    # Mimic nn.Linear init: uniform(-1/sqrt(fan_in), +1/sqrt(fan_in)),
    # weights stored in PyTorch layout (out_features, in_features).
    k1, k2, k3, k4 = jax.random.split(key, 4)
    lim1 = 1.0 / jnp.sqrt(IN_DIM)
    lim2 = 1.0 / jnp.sqrt(HID_DIM)
    w1 = jax.random.uniform(k1, (HID_DIM, IN_DIM), jnp.float32, -lim1, lim1)
    b1 = jax.random.uniform(k2, (HID_DIM,), jnp.float32, -lim1, lim1)
    w2 = jax.random.uniform(k3, (OUT_DIM, HID_DIM), jnp.float32, -lim2, lim2)
    b2 = jax.random.uniform(k4, (OUT_DIM,), jnp.float32, -lim2, lim2)
    return w1, b1, w2, b2


if __name__ == "__main__":
    key = jax.random.PRNGKey(0)
    kx, kp = jax.random.split(key)

    B = 8
    x = jax.random.normal(kx, (B, IN_DIM), jnp.float32)
    w1, b1, w2, b2 = init_params(kp)

    # Exercise the Pallas path directly (the dispatcher would route B=8 to XLA).
    out = my_mlp_pallas(x, w1, b1, w2, b2)
    out = jax.block_until_ready(out)

    ref = reference(x, w1, b1, w2, b2)
    assert out.shape == (B, OUT_DIM), out.shape
    assert jnp.allclose(out, ref, atol=1e-5, rtol=1e-5)
    print("KERNEL_OK")
</pallas_src>

<mosaic_0001>
module attributes {stable_mosaic.version = 11 : i64} {
  func.func @mlp_kernel(%arg0: i32, %arg1: memref<8x70xf32, #tpu.memory_space<vmem>>, %arg2: memref<16x70xf32, #tpu.memory_space<vmem>>, %arg3: memref<1x16xf32, #tpu.memory_space<vmem>>, %arg4: memref<5x16xf32, #tpu.memory_space<vmem>>, %arg5: memref<1x5xf32, #tpu.memory_space<vmem>>, %arg6: memref<8x5xf32, #tpu.memory_space<vmem>>) attributes {dimension_semantics = [#tpu.dimension_semantics<parallel>], iteration_bounds = array<i64: 1>, scalar_prefetch = 0 : i64, scratch_operands = 0 : i64, tpu.core_type = #tpu.core_type<tc>, window_params = [{transform_indices = @transform_0, window_bounds = array<i64: 8, 70>}, {pipeline_mode = #tpu.pipeline_mode<synchronous>, transform_indices = @transform_1, window_bounds = array<i64: 16, 70>}, {pipeline_mode = #tpu.pipeline_mode<synchronous>, transform_indices = @transform_2, window_bounds = array<i64: 1, 16>}, {pipeline_mode = #tpu.pipeline_mode<synchronous>, transform_indices = @transform_3, window_bounds = array<i64: 5, 16>}, {pipeline_mode = #tpu.pipeline_mode<synchronous>, transform_indices = @transform_4, window_bounds = array<i64: 1, 5>}, {transform_indices = @transform_5, window_bounds = array<i64: 8, 5>}]} {
    %c0 = arith.constant 0 : index
    %c0_0 = arith.constant 0 : index
    %0 = vector.load %arg1[%c0, %c0_0] : memref<8x70xf32, #tpu.memory_space<vmem>>, vector<8x70xf32>
    %c0_1 = arith.constant 0 : index
    %c0_2 = arith.constant 0 : index
    %1 = vector.load %arg2[%c0_1, %c0_2] : memref<16x70xf32, #tpu.memory_space<vmem>>, vector<16x70xf32>
    %cst = arith.constant dense<0.000000e+00> : vector<8x16xf32>
    %2 = tpu.matmul %0, %1, %cst {dimension_numbers = #tpu.dot_dimension_numbers<[1], [1], [0], [0], [0, 0, 1, 0], [], []>} : vector<8x70xf32>, vector<16x70xf32>, vector<8x16xf32> -> vector<8x16xf32>
    %c0_3 = arith.constant 0 : index
    %c0_4 = arith.constant 0 : index
    %3 = vector.load %arg3[%c0_3, %c0_4] : memref<1x16xf32, #tpu.memory_space<vmem>>, vector<1x16xf32>
    %4 = vector.broadcast %3 : vector<1x16xf32> to vector<8x16xf32>
    %5 = arith.addf %2, %4 : vector<8x16xf32>
    %cst_5 = arith.constant 0.000000e+00 : f32
    %6 = vector.broadcast %cst_5 : f32 to vector<8x16xf32>
    %7 = arith.cmpf oge, %5, %6 : vector<8x16xf32>
    %cst_6 = arith.constant 0.00999999977 : f32
    %8 = vector.broadcast %cst_6 : f32 to vector<8x16xf32>
    %9 = arith.mulf %8, %5 : vector<8x16xf32>
    %10 = arith.select %7, %5, %9 : vector<8x16xi1>, vector<8x16xf32>
    %c0_7 = arith.constant 0 : index
    %c0_8 = arith.constant 0 : index
    %11 = vector.load %arg4[%c0_7, %c0_8] : memref<5x16xf32, #tpu.memory_space<vmem>>, vector<5x16xf32>
    %cst_9 = arith.constant dense<0.000000e+00> : vector<8x5xf32>
    %12 = tpu.matmul %10, %11, %cst_9 {dimension_numbers = #tpu.dot_dimension_numbers<[1], [1], [0], [0], [0, 0, 1, 0], [], []>} : vector<8x16xf32>, vector<5x16xf32>, vector<8x5xf32> -> vector<8x5xf32>
    %c0_10 = arith.constant 0 : index
    %c0_11 = arith.constant 0 : index
    %13 = vector.load %arg5[%c0_10, %c0_11] : memref<1x5xf32, #tpu.memory_space<vmem>>, vector<1x5xf32>
    %14 = vector.broadcast %13 : vector<1x5xf32> to vector<8x5xf32>
    %15 = arith.addf %12, %14 : vector<8x5xf32>
    %c0_12 = arith.constant 0 : index
    %c0_13 = arith.constant 0 : index
    %16 = vector.load %arg6[%c0_12, %c0_13] : memref<8x5xf32, #tpu.memory_space<vmem>>, vector<8x5xf32>
    tpu.vector_store %arg6[%c0_12, %c0_13], %15 {strides = array<i32>} : memref<8x5xf32, #tpu.memory_space<vmem>>, vector<8x5xf32>,
    return
  }
  func.func @transform_0(%arg0: i32) -> (i32, i32) {
    %c0_i32 = arith.constant 0 : i32
    %c0_i32_0 = arith.constant 0 : i32
    return %arg0, %c0_i32 : i32, i32
  }
  func.func @transform_1(%arg0: i32) -> (i32, i32) {
    %c0_i32 = arith.constant 0 : i32
    %c0_i32_0 = arith.constant 0 : i32
    %c0_i32_1 = arith.constant 0 : i32
    return %c0_i32, %c0_i32_0 : i32, i32
  }
  func.func @transform_2(%arg0: i32) -> (i32, i32) {
    %c0_i32 = arith.constant 0 : i32
    %c0_i32_0 = arith.constant 0 : i32
    %c0_i32_1 = arith.constant 0 : i32
    return %c0_i32, %c0_i32_0 : i32, i32
  }
  func.func @transform_3(%arg0: i32) -> (i32, i32) {
    %c0_i32 = arith.constant 0 : i32
    %c0_i32_0 = arith.constant 0 : i32
    %c0_i32_1 = arith.constant 0 : i32
    return %c0_i32, %c0_i32_0 : i32, i32
  }
  func.func @transform_4(%arg0: i32) -> (i32, i32) {
    %c0_i32 = arith.constant 0 : i32
    %c0_i32_0 = arith.constant 0 : i32
    %c0_i32_1 = arith.constant 0 : i32
    return %c0_i32, %c0_i32_0 : i32, i32
  }
  func.func @transform_5(%arg0: i32) -> (i32, i32) {
    %c0_i32 = arith.constant 0 : i32
    %c0_i32_0 = arith.constant 0 : i32
    return %arg0, %c0_i32 : i32, i32
  }
}

</mosaic_0001>

<llo_original>
// kernel: my_mlp_pallas.1
$region0: #{my_mlp_pallas.1}
  #allocation0 [shape = 'u32[]', space=smem, size = 0x4, offset = 0x4, fixed_abs, tag = 'smem constant byte address 0x4 - core index']
  #allocation1 [shape = 'u32[144,128]{1,0:T(1,128)}', space=vmem, size = 0x12000, scoped, tag = 'internal scratch']
  %s0 = inlined_call_operand.hbm [shape: f32[8,70], index: 0, kind: input, shape index: {}]
  %s1 = inlined_call_operand.hbm [shape: f32[16,70], index: 1, kind: input, shape index: {}]
  %s2 = inlined_call_operand.vmem [shape: f32[1,16], index: 2, kind: input, shape index: {}]
  %s3 = inlined_call_operand.vmem [shape: f32[5,16], index: 3, kind: input, shape index: {}]
  %s4 = inlined_call_operand.vmem [shape: f32[1,5], index: 4, kind: input, shape index: {}]
  %s5 = inlined_call_operand.hbm [shape: f32[8,5], index: 5, kind: output, shape index: {}]
  %s6 = sld [smem:[#allocation0]]
  $region38: #{my_mlp_pallas.1} parent=0
    _
  %s8 = ssub.s32 1, %s6
  %s9 = scalar_select 0, %s8, %s6
  $region1: #{my_mlp_pallas.1} parent=0
    #allocation2 [shape = 'u8[4096]{0}', space=vmem, size = 0x1000, scoped, tag = 'input window, operand 0, single buffered']
    #allocation3 [shape = 's32[1]{0}', space=sflag, size = 0x4, scoped, tag = 'scoped memory for my_mlp_pallas.1']
    #allocation4 [shape = 's32[1]{0}', space=sflag, size = 0x4, scoped, tag = 'scoped memory for my_mlp_pallas.1']
    #allocation5 [shape = 'u8[8192]{0}', space=vmem, size = 0x2000, scoped, tag = 'input window, operand 1, single buffered']
    #allocation6 [shape = 's32[1]{0}', space=sflag, size = 0x4, scoped, tag = 'scoped memory for my_mlp_pallas.1']
    #allocation7 [shape = 'u8[4096]{0}', space=vmem, size = 0x1000, scoped, tag = 'output window, operand 0, single buffered']
    %10 = vsyncpa [#allocation3], 0
    %11 = vsyncpa [#allocation6], 0
    %12 = vsyncpa [#allocation4], 0
    // Predicated region
    $region2: #{my_mlp_pallas.1} parent=1 // pred_check
      _
    $region3: #{my_mlp_pallas.1} parent=1 // pred_check_branch
      %14 = sbr.rel (0) target = $region5
    $region4: #{my_mlp_pallas.1} parent=1 // pred_region
      %s16 = ssub.s32 128, 128
      %17 = vsyncadd [#allocation3], %s16
      %s19 = sshll.u32 [#allocation2], 4
      %s20 = int_to_ptr.vmem [resolvable:$true] %s19
      %22 = dma.hbm_to_vmem [thread:$0]  %s0, 128, %s20, [#allocation3]
    $region5: #{my_mlp_pallas.1} parent=1 // pred_fallthru
      _
    // Predicated region
    $region6: #{my_mlp_pallas.1} parent=1 // pred_check
      _
    $region7: #{my_mlp_pallas.1} parent=1 // pred_check_branch
      %24 = sbr.rel (0) target = $region9
    $region8: #{my_mlp_pallas.1} parent=1 // pred_region
      %s26 = ssub.s32 256, 256
      %27 = vsyncadd [#allocation6], %s26
      %s28 = sshll.u32 [#allocation5], 4
      %s29 = int_to_ptr.vmem [resolvable:$true] %s28
      %34 = dma.hbm_to_vmem [thread:$0]  %s1, 256, %s29, [#allocation6], 128, 128, 8
    $region9: #{my_mlp_pallas.1} parent=1 // pred_fallthru
      _
    // Predicated region
    $region10: #{my_mlp_pallas.1} parent=1 // pred_check
      _
    $region11: #{my_mlp_pallas.1} parent=1 // pred_check_branch
      %36 = sbr.rel (0) target = $region13
    $region12: #{my_mlp_pallas.1} parent=1 // pred_region
      _
    $region13: #{my_mlp_pallas.1} parent=1 // pred_fallthru
      _
    // Predicated region
    $region14: #{my_mlp_pallas.1} parent=1 // pred_check
      _
    $region15: #{my_mlp_pallas.1} parent=1 // pred_check_branch
      %38 = sbr.rel (0) target = $region17
    $region16: #{my_mlp_pallas.1} parent=1 // pred_region
      _
    $region17: #{my_mlp_pallas.1} parent=1 // pred_fallthru
      _
    // Predicated region
    $region18: #{my_mlp_pallas.1} parent=1 // pred_check
      _
    $region19: #{my_mlp_pallas.1} parent=1 // pred_check_branch
      %40 = sbr.rel (0) target = $region21
    $region20: #{my_mlp_pallas.1} parent=1 // pred_region
      _
    $region21: #{my_mlp_pallas.1} parent=1 // pred_fallthru
      _
    // Predicated region
    $region22: #{my_mlp_pallas.1} parent=1 // pred_check
      _
    $region23: #{my_mlp_pallas.1} parent=1 // pred_check_branch
      %42 = sbr.rel (0) target = $region25
    $region24: #{my_mlp_pallas.1} parent=1 // pred_region
      %43 = dma.done [#allocation3], 128
    $region25: #{my_mlp_pallas.1} parent=1 // pred_fallthru
      _
    // Predicated region
    $region26: #{my_mlp_pallas.1} parent=1 // pred_check
      _
    $region27: #{my_mlp_pallas.1} parent=1 // pred_check_branch
      %45 = sbr.rel (0) target = $region29
    $region28: #{my_mlp_pallas.1} parent=1 // pred_region
      %46 = dma.done [#allocation6], 256
    $region29: #{my_mlp_pallas.1} parent=1 // pred_fallthru
      _
    %v47 = vld [vmem:[#allocation2] sm:$0xff]
    %v48 = vld [vmem:[#allocation5] sm:$0xff]
    %v49 = vld [vmem:[#allocation5 + $0x8] sm:$0xff]
    %v50 = vld [vmem:[%s2] sm:$0x1]
    %v52 = vlaneseq
    %v53 = vshrl.u32 %v52, 7
    %v54 = vsub.s32 0, %v53
    %v55 = vrot.slane %v50, %v54
    %vm57 = vcmask 572416
    %v59 = vsel %vm57, %v47, 0
    %v62 = vsel %vm57, %v48, 0
    %v65 = vsel %vm57, %v49, 0
    %67 = vmatprep.subr.mxu0 0.0
    %68 = vmatpush1.xpose.msra.mxu0 %v62
    %69 = vmatprep.subr.mxu0 0.0
    %70 = vmatpush1.xpose.msra.mxu0 %v65
    %71 = vmatprep.subr.mxu0 0.0
    %72 = vmatpush1.xpose.msra.mxu0 0.0
    %73 = vmatprep.subr.mxu0 0.0
    %74 = vmatpush1.xpose.msra.mxu0 0.0
    %75 = vmatprep.subr.mxu0 0.0
    %76 = vmatpush1.xpose.msra.mxu0 0.0
    %77 = vmatprep.subr.mxu0 0.0
    %78 = vmatpush1.xpose.msra.mxu0 0.0
    %79 = vmatprep.subr.mxu0 0.0
    %80 = vmatpush1.xpose.msra.mxu0 0.0
    %81 = vmatprep.subr.mxu0 0.0
    %82 = vmatpush1.xpose.msra.mxu0 0.0
    %83 = vmatprep.subr.mxu0 0.0
    %84 = vmatpush1.xpose.msra.mxu0 0.0
    %85 = vmatprep.subr.mxu0 0.0
    %86 = vmatpush1.xpose.msra.mxu0 0.0
    %87 = vmatprep.subr.mxu0 0.0
    %88 = vmatpush1.xpose.msra.mxu0 0.0
    %89 = vmatprep.subr.mxu0 0.0
    %90 = vmatpush1.xpose.msra.mxu0 0.0
    %91 = vmatprep.subr.mxu0 0.0
    %92 = vmatpush1.xpose.msra.mxu0 0.0
    %93 = vmatprep.subr.mxu0 0.0
    %94 = vmatpush1.xpose.msra.mxu0 0.0
    %95 = vmatprep.subr.mxu0 0.0
    %96 = vmatpush1.xpose.msra.mxu0 0.0
    %97 = vmatprep.subr.mxu0 0.0
    %98 = vmatpush1.xpose.msra.mxu0 0.0
    %99 = vmatprep.subr.mxu0 0.0
    %100 = vmatpush1.xpose.msra.mxu0 0.0
    %101 = vmatprep.subr.mxu0 0.0
    %102 = vmatpush1.xpose.msra.mxu0 0.0
    %103 = vmatprep.subr.mxu0 0.0
    %104 = vmatpush1.xpose.msra.mxu0 0.0
    %105 = vmatprep.subr.mxu0 0.0
    %106 = vmatpush1.xpose.msra.mxu0 0.0
    %107 = vmatprep.subr.mxu0 0.0
    %108 = vmatpush1.xpose.msra.mxu0 0.0
    %109 = vmatprep.subr.mxu0 0.0
    %110 = vmatpush1.xpose.msra.mxu0 0.0
    %111 = vmatprep.subr.mxu0 0.0
    %112 = vmatpush1.xpose.msra.mxu0 0.0
    %113 = vmatprep.subr.mxu0 0.0
    %114 = vmatpush1.xpose.msra.mxu0 0.0
    %115 = vmatprep.subr.mxu0 0.0
    %116 = vmatpush1.xpose.msra.mxu0 0.0
    %117 = vmatprep.subr.mxu0 0.0
    %118 = vmatpush1.xpose.msra.mxu0 0.0
    %119 = vmatprep.subr.mxu0 0.0
    %120 = vmatpush1.xpose.msra.mxu0 0.0
    %121 = vmatprep.subr.mxu0 0.0
    %122 = vmatpush1.xpose.msra.mxu0 0.0
    %123 = vmatprep.subr.mxu0 0.0
    %124 = vmatpush1.xpose.msra.mxu0 0.0
    %125 = vmatprep.subr.mxu0 0.0
    %126 = vmatpush1.xpose.msra.mxu0 0.0
    %127 = vmatprep.subr.mxu0 0.0
    %128 = vmatpush1.xpose.msra.mxu0 0.0
    %129 = vmatprep.subr.mxu0 0.0
    %130 = vmatpush1.xpose.msra.mxu0 0.0
    %131 = vmatprep.mubr.f32.mxu0 0.0
    %132 = vmatmul.mubr.f32.gmra.mrb[0].mxu0 %v59
    %v133 = vpop.f32.mrb[0].mxu0
    %v134 = vadd.f32 %v55, %v133
    %v135 = vpop.f32.mrb[0].mxu0
    %136 = vdwg.mxu0
    %vm137 = vcmp.ge.f32.partialorder %v134, 0.0
    %v138 = vmul.f32 %v134, 0.01
    %v139 = vsel %vm137, %v134, %v138
    %v140 = vld [vmem:[%s3] sm:$0x1f]
    %v141 = vld [vmem:[%s4] sm:$0x1]
    %v143 = vlaneseq
    %v144 = vshrl.u32 %v143, 7
    %v145 = vsub.s32 0, %v144
    %v146 = vrot.slane %v141, %v145
    %vm148 = vcmask 130048
    %v150 = vsel %vm148, %v139, 0
    %v153 = vsel %vm148, %v140, 0
    %155 = vmatprep.subr.mxu0 0.0
    %156 = vmatpush1.xpose.msra.mxu0 %v153
    %157 = vmatprep.subr.mxu0 0.0
    %158 = vmatpush1.xpose.msra.mxu0 0.0
    %159 = vmatprep.subr.mxu0 0.0
    %160 = vmatpush1.xpose.msra.mxu0 0.0
    %161 = vmatprep.subr.mxu0 0.0
    %162 = vmatpush1.xpose.msra.mxu0 0.0
    %163 = vmatprep.subr.mxu0 0.0
    %164 = vmatpush1.xpose.msra.mxu0 0.0
    %165 = vmatprep.subr.mxu0 0.0
    %166 = vmatpush1.xpose.msra.mxu0 0.0
    %167 = vmatprep.subr.mxu0 0.0
    %168 = vmatpush1.xpose.msra.mxu0 0.0
    %169 = vmatprep.subr.mxu0 0.0
    %170 = vmatpush1.xpose.msra.mxu0 0.0
    %171 = vmatprep.subr.mxu0 0.0
    %172 = vmatpush1.xpose.msra.mxu0 0.0
    %173 = vmatprep.subr.mxu0 0.0
    %174 = vmatpush1.xpose.msra.mxu0 0.0
    %175 = vmatprep.subr.mxu0 0.0
    %176 = vmatpush1.xpose.msra.mxu0 0.0
    %177 = vmatprep.subr.mxu0 0.0
    %178 = vmatpush1.xpose.msra.mxu0 0.0
    %179 = vmatprep.subr.mxu0 0.0
    %180 = vmatpush1.xpose.msra.mxu0 0.0
    %181 = vmatprep.subr.mxu0 0.0
    %182 = vmatpush1.xpose.msra.mxu0 0.0
    %183 = vmatprep.subr.mxu0 0.0
    %184 = vmatpush1.xpose.msra.mxu0 0.0
    %185 = vmatprep.subr.mxu0 0.0
    %186 = vmatpush1.xpose.msra.mxu0 0.0
    %187 = vmatprep.subr.mxu0 0.0
    %188 = vmatpush1.xpose.msra.mxu0 0.0
    %189 = vmatprep.subr.mxu0 0.0
    %190 = vmatpush1.xpose.msra.mxu0 0.0
    %191 = vmatprep.subr.mxu0 0.0
    %192 = vmatpush1.xpose.msra.mxu0 0.0
    %193 = vmatprep.subr.mxu0 0.0
    %194 = vmatpush1.xpose.msra.mxu0 0.0
    %195 = vmatprep.subr.mxu0 0.0
    %196 = vmatpush1.xpose.msra.mxu0 0.0
    %197 = vmatprep.subr.mxu0 0.0
    %198 = vmatpush1.xpose.msra.mxu0 0.0
    %199 = vmatprep.subr.mxu0 0.0
    %200 = vmatpush1.xpose.msra.mxu0 0.0
    %201 = vmatprep.subr.mxu0 0.0
    %202 = vmatpush1.xpose.msra.mxu0 0.0
    %203 = vmatprep.subr.mxu0 0.0
    %204 = vmatpush1.xpose.msra.mxu0 0.0
    %205 = vmatprep.subr.mxu0 0.0
    %206 = vmatpush1.xpose.msra.mxu0 0.0
    %207 = vmatprep.subr.mxu0 0.0
    %208 = vmatpush1.xpose.msra.mxu0 0.0
    %209 = vmatprep.subr.mxu0 0.0
    %210 = vmatpush1.xpose.msra.mxu0 0.0
    %211 = vmatprep.subr.mxu0 0.0
    %212 = vmatpush1.xpose.msra.mxu0 0.0
    %213 = vmatprep.subr.mxu0 0.0
    %214 = vmatpush1.xpose.msra.mxu0 0.0
    %215 = vmatprep.subr.mxu0 0.0
    %216 = vmatpush1.xpose.msra.mxu0 0.0
    %217 = vmatprep.subr.mxu0 0.0
    %218 = vmatpush1.xpose.msra.mxu0 0.0
    %219 = vmatprep.mubr.f32.mxu0 0.0
    %220 = vmatmul.mubr.f32.gmra.mrb[0].mxu0 %v150
    %v221 = vpop.f32.mrb[0].mxu0
    %v222 = vadd.f32 %v146, %v221
    %v223 = vpop.f32.mrb[0].mxu0
    %224 = vdwg.mxu0
    %vm225 = vcmask 39936
    %226 = vst.msk [vmem:[#allocation7] sm:$0xff] %vm225, %v222
    // Predicated region
    $region30: #{my_mlp_pallas.1} parent=1 // pred_check
      _
    $region31: #{my_mlp_pallas.1} parent=1 // pred_check_branch
      %228 = sbr.rel (0) target = $region33
    $region32: #{my_mlp_pallas.1} parent=1 // pred_region
      %s230 = ssub.s32 128, 128
      %231 = vsyncadd [#allocation4], %s230
      %s233 = sshll.u32 [#allocation7], 4
      %s234 = int_to_ptr.vmem [resolvable:$true] %s233
      %236 = dma.vmem_to_hbm [thread:$0]  %s234, 128, %s5, [#allocation4]
    $region33: #{my_mlp_pallas.1} parent=1 // pred_fallthru
      _
    // Predicated region
    $region34: #{my_mlp_pallas.1} parent=1 // pred_check
      _
    $region35: #{my_mlp_pallas.1} parent=1 // pred_check_branch
      %238 = sbr.rel (0) target = $region37
    $region36: #{my_mlp_pallas.1} parent=1 // pred_region
      %239 = dma.done [#allocation4], 128
    $region37: #{my_mlp_pallas.1} parent=1 // pred_fallthru
      _
    %240 = vsyncpa [#allocation3], 1
    %241 = vsyncpa [#allocation6], 1
    %242 = vsyncpa [#allocation4], 1

</llo_original>
